<compile_context>
chip_gen: v5e
topology: v5e:2x2
jax: 0.10.0
libtpu: 0.0.40
codegen_flags: <defaults>
</compile_context>

<pallas_src>
import math

import jax
import jax.numpy as jnp
from jax.experimental import pallas as pl
from jax.experimental.pallas import tpu as pltpu

# ----------------------------- problem sizes -------------------------------
IS = 16        # input_size
ZDIM = 8       # latent dim
H = 32         # hidden width
B_TILE = 256   # batch rows per grid step (fills MXU / lane dim on v5e..v7x)

# ------------------------- packed weight-slab layout ------------------------
# One (208, 32) f32 slab holding the six TRANSPOSED weights (W^T, (out, in))
# and the six biases as columns. All block starts are multiples of 8.
R_WE1T = 0      # rows   0: 32  encoder L1  W^T (H, IS)
R_WE2T = 32     # rows  32: 64  encoder L2  W^T (H, H)
R_WE3T = 64     # rows  64: 80  encoder head W^T (2*ZDIM, H)
R_WD1T = 80     # rows  80:112  decoder L1  W^T (H, ZDIM)
R_WD2T = 112    # rows 112:144  decoder L2  W^T (H, H)
R_WD3T = 144    # rows 144:176  decoder head W^T (2*IS-1, H), padded to 32 rows
R_BIAS = 176    # rows 176:208  bias columns: lane j = bias_j (be1,be2,be3,bd1,bd2,bd3)
SLAB_ROWS = 208
SLAB_COLS = H   # 32

VAE_INTERPRET = False  # set True to debug on CPU emulator


def _dot(w, x):
    return jnp.dot(w, x, preferred_element_type=jnp.float32)


def _biases(w_ref):
    bias = w_ref[R_BIAS:R_BIAS + H, :]          # one (32, 32) load
    be1 = bias[:, 0:1]
    be2 = bias[:, 1:2]
    be3 = bias[:2 * ZDIM, 2:3]
    bd1 = bias[:, 3:4]
    bd2 = bias[:, 4:5]
    bd3 = bias[:, 5:6]
    return be1, be2, be3, bd1, bd2, bd3


# ------------------------------ step 1 kernel ------------------------------
def vae_step1_kernel(xT_ref, epsT_ref, w_ref, out_ref):
    be1, be2, be3, bd1, bd2, bd3 = _biases(w_ref)

    xT = xT_ref[...]                                            # (IS, Bt)
    # Encoder MLP (feature-major: h^T = W^T @ x^T)
    h = jnp.maximum(_dot(w_ref[R_WE1T:R_WE1T + H, :IS], xT) + be1, 0.0)
    h = jnp.maximum(_dot(w_ref[R_WE2T:R_WE2T + H, :], h) + be2, 0.0)
    y_enc = _dot(w_ref[R_WE3T:R_WE3T + 2 * ZDIM, :], h) + be3   # (16, Bt)
    mu = y_enc[:ZDIM, :]                                        # rows 0:8
    sigma = y_enc[ZDIM:, :]                                     # rows 8:16
    # Reparameterized Normal(mu, exp(sigma)) sample (sigma is log-std, as in ref)
    z = mu + jnp.exp(sigma) * epsT_ref[...]                     # (8, Bt)
    # Decoder MLP (single fused head matmul; head padded to 32 rows, row 31 = 0)
    hd = jnp.maximum(_dot(w_ref[R_WD1T:R_WD1T + H, :ZDIM], z) + bd1, 0.0)
    hd = jnp.maximum(_dot(w_ref[R_WD2T:R_WD2T + H, :], hd) + bd2, 0.0)
    y_dec = _dot(w_ref[R_WD3T:R_WD3T + H, :], hd) + bd3         # (32, Bt)
    # sigmoid only on the bernoulli-logit row (row 2*(IS-1) == 30)
    row = jax.lax.broadcasted_iota(jnp.int32, y_dec.shape, 0)
    out_ref[...] = jnp.where(row == 2 * (IS - 1), jax.nn.sigmoid(y_dec), y_dec)


# ------------------------------ step 2 kernel ------------------------------
def vae_step2_kernel(zT_ref, epsT_ref, uT_ref, w_ref, out_ref):
    be1, be2, be3, bd1, bd2, bd3 = _biases(w_ref)

    zT = zT_ref[...]                                            # (ZDIM, Bt)
    # Decoder MLP
    hd = jnp.maximum(_dot(w_ref[R_WD1T:R_WD1T + H, :ZDIM], zT) + bd1, 0.0)
    hd = jnp.maximum(_dot(w_ref[R_WD2T:R_WD2T + H, :], hd) + bd2, 0.0)
    y_dec = _dot(w_ref[R_WD3T:R_WD3T + H, :], hd) + bd3         # (32, Bt)
    mu_g = y_dec[:IS - 1, :]                                    # rows 0:15
    sig_g = y_dec[IS - 1:2 * (IS - 1), :]                       # rows 15:30
    p = jax.nn.sigmoid(y_dec[2 * (IS - 1):2 * (IS - 1) + 1, :])  # (1, Bt)
    # Sample x_gauss ~ Normal(mu_g, exp(sig_g)), x_bern ~ Bernoulli(p)
    x_gauss = mu_g + jnp.exp(sig_g) * epsT_ref[...]             # (15, Bt)
    x_bern = (uT_ref[...] < p).astype(jnp.float32)              # (1, Bt)
    # Encoder L1 on concat([x_gauss; x_bern]); the bernoulli column is a rank-1
    # VPU broadcast multiply-add instead of an extra MXU push.
    we1T = w_ref[R_WE1T:R_WE1T + H, :IS]                        # (32, 16)
    h = _dot(we1T[:, :IS - 1], x_gauss) + we1T[:, IS - 1:IS] * x_bern + be1
    h = jnp.maximum(h, 0.0)
    h = jnp.maximum(_dot(w_ref[R_WE2T:R_WE2T + H, :], h) + be2, 0.0)
    out_ref[...] = _dot(w_ref[R_WE3T:R_WE3T + 2 * ZDIM, :], h) + be3   # (16, Bt)


# ------------------------------- wrappers -----------------------------------
def _pad_T(a, n_rows, b_pad):
    """Transpose (B, f) -> (f, B) and zero-pad the batch (lane) axis to b_pad."""
    aT = a.T
    return jnp.pad(aT, ((0, n_rows - aT.shape[0]), (0, b_pad - aT.shape[1])))


def vae_step1(x, eps, slab):
    """x: (B, IS), eps: (B, ZDIM) -> (mu_g (B,15), sig_g (B,15), p_bern (B,))."""
    b = x.shape[0]
    b_pad = pl.cdiv(b, B_TILE) * B_TILE
    grid = (b_pad // B_TILE,)
    out = pl.pallas_call(
        vae_step1_kernel,
        out_shape=jax.ShapeDtypeStruct((H, b_pad), jnp.float32),
        grid=grid,
        in_specs=[
            pl.BlockSpec((IS, B_TILE), lambda i: (0, i)),
            pl.BlockSpec((ZDIM, B_TILE), lambda i: (0, i)),
            pl.BlockSpec((SLAB_ROWS, SLAB_COLS), lambda i: (0, 0)),  # resident
        ],
        out_specs=pl.BlockSpec((H, B_TILE), lambda i: (0, i)),
        compiler_params=pltpu.CompilerParams(dimension_semantics=("parallel",)),
        interpret=VAE_INTERPRET,
    )(_pad_T(x, IS, b_pad), _pad_T(eps, ZDIM, b_pad), slab)
    mu_g = out[: IS - 1, :b].T
    sig_g = out[IS - 1: 2 * (IS - 1), :b].T
    p_bern = out[2 * (IS - 1), :b]           # matches torch's xhat[:, -1]
    return mu_g, sig_g, p_bern


def vae_step2(z, eps_g, u, slab):
    """z: (B, ZDIM), eps_g: (B, IS-1), u: (B, 1) -> (mu (B,ZDIM), sigma (B,ZDIM))."""
    b = z.shape[0]
    b_pad = pl.cdiv(b, B_TILE) * B_TILE
    grid = (b_pad // B_TILE,)
    out = pl.pallas_call(
        vae_step2_kernel,
        out_shape=jax.ShapeDtypeStruct((2 * ZDIM, b_pad), jnp.float32),
        grid=grid,
        in_specs=[
            pl.BlockSpec((ZDIM, B_TILE), lambda i: (0, i)),
            pl.BlockSpec((IS - 1, B_TILE), lambda i: (0, i)),
            pl.BlockSpec((1, B_TILE), lambda i: (0, i)),
            pl.BlockSpec((SLAB_ROWS, SLAB_COLS), lambda i: (0, 0)),  # resident
        ],
        out_specs=pl.BlockSpec((2 * ZDIM, B_TILE), lambda i: (0, i)),
        compiler_params=pltpu.CompilerParams(dimension_semantics=("parallel",)),
        interpret=VAE_INTERPRET,
    )(_pad_T(z, ZDIM, b_pad), _pad_T(eps_g, IS - 1, b_pad),
      _pad_T(u, 1, b_pad), slab)
    return out[:ZDIM, :b].T, out[ZDIM:2 * ZDIM, :b].T


# --------------------------- deterministic params ---------------------------
def init_params(key):
    """Returns (packed_slab, raw_param_dict). Raw params feed the pure-JAX ref."""
    def lin(k, fan_in, fan_out):
        k1, k2 = jax.random.split(k)
        bound = 1.0 / math.sqrt(fan_in)
        w = jax.random.uniform(k1, (fan_in, fan_out), jnp.float32, -bound, bound)
        b = jax.random.uniform(k2, (fan_out,), jnp.float32, -bound, bound)
        return w, b

    ks = jax.random.split(key, 6)
    we1, be1 = lin(ks[0], IS, H)
    we2, be2 = lin(ks[1], H, H)
    we3, be3 = lin(ks[2], H, 2 * ZDIM)
    wd1, bd1 = lin(ks[3], ZDIM, H)
    wd2, bd2 = lin(ks[4], H, H)
    wd3, bd3 = lin(ks[5], H, 2 * IS - 1)

    slab = jnp.zeros((SLAB_ROWS, SLAB_COLS), jnp.float32)

    def put(s, r, m):      # m is already (rows, cols<=32)
        return s.at[r:r + m.shape[0], : m.shape[1]].set(m)

    slab = put(slab, R_WE1T, we1.T)     # (32, 16)
    slab = put(slab, R_WE2T, we2.T)     # (32, 32)
    slab = put(slab, R_WE3T, we3.T)     # (16, 32)
    slab = put(slab, R_WD1T, wd1.T)     # (32, 8)
    slab = put(slab, R_WD2T, wd2.T)     # (32, 32)
    slab = put(slab, R_WD3T, wd3.T)     # (31, 32), row 31 stays zero
    # Biases as columns (broadcast along batch lanes inside the kernel).
    slab = slab.at[R_BIAS:R_BIAS + H, 0].set(be1)
    slab = slab.at[R_BIAS:R_BIAS + H, 1].set(be2)
    slab = slab.at[R_BIAS:R_BIAS + 2 * ZDIM, 2].set(be3)
    slab = slab.at[R_BIAS:R_BIAS + H, 3].set(bd1)
    slab = slab.at[R_BIAS:R_BIAS + H, 4].set(bd2)
    slab = slab.at[R_BIAS:R_BIAS + 2 * IS - 1, 5].set(bd3)

    raw = dict(we1=we1, be1=be1, we2=we2, be2=be2, we3=we3, be3=be3,
               wd1=wd1, bd1=bd1, wd2=wd2, bd2=bd2, wd3=wd3, bd3=bd3)
    return slab, raw


# --------------------------- pure-JAX references ----------------------------
def _rdot(a, b):
    return jnp.dot(a, b, precision=jax.lax.Precision.HIGHEST)


def ref_step1(x, eps, p):
    h = jax.nn.relu(_rdot(x, p["we1"]) + p["be1"])
    h = jax.nn.relu(_rdot(h, p["we2"]) + p["be2"])
    y = _rdot(h, p["we3"]) + p["be3"]
    mu, sigma = y[:, :ZDIM], y[:, ZDIM:]
    z = mu + jnp.exp(sigma) * eps
    hd = jax.nn.relu(_rdot(z, p["wd1"]) + p["bd1"])
    hd = jax.nn.relu(_rdot(hd, p["wd2"]) + p["bd2"])
    yd = _rdot(hd, p["wd3"]) + p["bd3"]
    return yd[:, : IS - 1], yd[:, IS - 1: 2 * (IS - 1)], jax.nn.sigmoid(yd[:, -1])


def ref_step2(z, eps, u, p):
    hd = jax.nn.relu(_rdot(z, p["wd1"]) + p["bd1"])
    hd = jax.nn.relu(_rdot(hd, p["wd2"]) + p["bd2"])
    yd = _rdot(hd, p["wd3"]) + p["bd3"]
    mu_g, sig_g = yd[:, : IS - 1], yd[:, IS - 1: 2 * (IS - 1)]
    prob = jax.nn.sigmoid(yd[:, -1:])
    x_gauss = mu_g + jnp.exp(sig_g) * eps
    x_bern = (u < prob).astype(jnp.float32)
    x = jnp.concatenate([x_gauss, x_bern], axis=1)
    h = jax.nn.relu(_rdot(x, p["we1"]) + p["be1"])
    h = jax.nn.relu(_rdot(h, p["we2"]) + p["be2"])
    y = _rdot(h, p["we3"]) + p["be3"]
    return y[:, :ZDIM], y[:, ZDIM:]


if __name__ == "__main__":
    key = jax.random.PRNGKey(0)
    k_param, k_x, k_eps, k_z, k_eps_g, k_u = jax.random.split(key, 6)

    slab, raw = init_params(k_param)

    B_TOTAL = 512   # 2 batch tiles of 256 -> exercises the grid + resident slab

    # ---- step == 1 ----
    x = jax.random.normal(k_x, (B_TOTAL, IS), jnp.float32)
    eps = jax.random.normal(k_eps, (B_TOTAL, ZDIM), jnp.float32)
    mu_g, sig_g, p_bern = vae_step1(x, eps, slab)
    jax.block_until_ready((mu_g, sig_g, p_bern))
    assert mu_g.shape == (B_TOTAL, IS - 1) and sig_g.shape == (B_TOTAL, IS - 1)
    assert p_bern.shape == (B_TOTAL,)

    r_mu_g, r_sig_g, r_p = ref_step1(x, eps, raw)
    assert jnp.allclose(mu_g, r_mu_g, rtol=2e-3, atol=2e-3)
    assert jnp.allclose(sig_g, r_sig_g, rtol=2e-3, atol=2e-3)
    assert jnp.allclose(p_bern, r_p, rtol=2e-3, atol=2e-3)

    # ---- step == 2 ----
    z = jax.random.normal(k_z, (B_TOTAL, ZDIM), jnp.float32)
    eps_g = jax.random.normal(k_eps_g, (B_TOTAL, IS - 1), jnp.float32)
    u = jax.random.uniform(k_u, (B_TOTAL, 1), jnp.float32)
    mu, sigma = vae_step2(z, eps_g, u, slab)
    jax.block_until_ready((mu, sigma))
    assert mu.shape == (B_TOTAL, ZDIM) and sigma.shape == (B_TOTAL, ZDIM)

    r_mu, r_sigma = ref_step2(z, eps_g, u, raw)
    assert jnp.allclose(mu, r_mu, rtol=2e-3, atol=2e-3)
    assert jnp.allclose(sigma, r_sigma, rtol=2e-3, atol=2e-3)

    # TODO(synk): loss_function / count_params are host-side utilities, not part
    # of the forward pass, and are intentionally not implemented as kernels.
    print("KERNEL_OK")
</pallas_src>

<mosaic_0001>
module attributes {stable_mosaic.version = 11 : i64} {
  func.func @vae_step1_kernel(%arg0: i32, %arg1: memref<16x256xf32, #tpu.memory_space<vmem>>, %arg2: memref<8x256xf32, #tpu.memory_space<vmem>>, %arg3: memref<208x32xf32, #tpu.memory_space<vmem>>, %arg4: memref<32x256xf32, #tpu.memory_space<vmem>>) attributes {dimension_semantics = [#tpu.dimension_semantics<parallel>], iteration_bounds = array<i64: 2>, scalar_prefetch = 0 : i64, scratch_operands = 0 : i64, tpu.core_type = #tpu.core_type<tc>, window_params = [{transform_indices = @transform_0, window_bounds = array<i64: 16, 256>}, {transform_indices = @transform_1, window_bounds = array<i64: 8, 256>}, {pipeline_mode = #tpu.pipeline_mode<synchronous>, transform_indices = @transform_2, window_bounds = array<i64: 208, 32>}, {transform_indices = @transform_3, window_bounds = array<i64: 32, 256>}]} {
    %c176 = arith.constant 176 : index
    %c0 = arith.constant 0 : index
    %0 = vector.load %arg3[%c176, %c0] : memref<208x32xf32, #tpu.memory_space<vmem>>, vector<32x32xf32>
    %1 = vector.extract_strided_slice %0 {offsets = [0, 0], sizes = [32, 1], strides = [1, 1]} : vector<32x32xf32> to vector<32x1xf32>
    %2 = vector.extract_strided_slice %0 {offsets = [0, 1], sizes = [32, 1], strides = [1, 1]} : vector<32x32xf32> to vector<32x1xf32>
    %3 = vector.extract_strided_slice %0 {offsets = [0, 2], sizes = [16, 1], strides = [1, 1]} : vector<32x32xf32> to vector<16x1xf32>
    %4 = vector.extract_strided_slice %0 {offsets = [0, 3], sizes = [32, 1], strides = [1, 1]} : vector<32x32xf32> to vector<32x1xf32>
    %5 = vector.extract_strided_slice %0 {offsets = [0, 4], sizes = [32, 1], strides = [1, 1]} : vector<32x32xf32> to vector<32x1xf32>
    %6 = vector.extract_strided_slice %0 {offsets = [0, 5], sizes = [32, 1], strides = [1, 1]} : vector<32x32xf32> to vector<32x1xf32>
    %c0_0 = arith.constant 0 : index
    %c0_1 = arith.constant 0 : index
    %7 = vector.load %arg1[%c0_0, %c0_1] : memref<16x256xf32, #tpu.memory_space<vmem>>, vector<16x256xf32>
    %c0_2 = arith.constant 0 : index
    %c0_3 = arith.constant 0 : index
    %8 = vector.load %arg3[%c0_2, %c0_3] : memref<208x32xf32, #tpu.memory_space<vmem>>, vector<32x16xf32>
    %cst = arith.constant dense<0.000000e+00> : vector<32x256xf32>
    %9 = tpu.matmul %8, %7, %cst {dimension_numbers = #tpu.dot_dimension_numbers<[1], [0], [0], [1], [0, 0, 1, 1], [], []>} : vector<32x16xf32>, vector<16x256xf32>, vector<32x256xf32> -> vector<32x256xf32>
    %10 = vector.broadcast %1 : vector<32x1xf32> to vector<32x256xf32>
    %11 = arith.addf %9, %10 : vector<32x256xf32>
    %cst_4 = arith.constant 0.000000e+00 : f32
    %12 = vector.broadcast %cst_4 : f32 to vector<32x256xf32>
    %13 = arith.maximumf %11, %12 : vector<32x256xf32>
    %c32 = arith.constant 32 : index
    %c0_5 = arith.constant 0 : index
    %14 = vector.load %arg3[%c32, %c0_5] : memref<208x32xf32, #tpu.memory_space<vmem>>, vector<32x32xf32>
    %cst_6 = arith.constant dense<0.000000e+00> : vector<32x256xf32>
    %15 = tpu.matmul %14, %13, %cst_6 {dimension_numbers = #tpu.dot_dimension_numbers<[1], [0], [0], [1], [0, 0, 1, 1], [], []>} : vector<32x32xf32>, vector<32x256xf32>, vector<32x256xf32> -> vector<32x256xf32>
    %16 = vector.broadcast %2 : vector<32x1xf32> to vector<32x256xf32>
    %17 = arith.addf %15, %16 : vector<32x256xf32>
    %cst_7 = arith.constant 0.000000e+00 : f32
    %18 = vector.broadcast %cst_7 : f32 to vector<32x256xf32>
    %19 = arith.maximumf %17, %18 : vector<32x256xf32>
    %c64 = arith.constant 64 : index
    %c0_8 = arith.constant 0 : index
    %20 = vector.load %arg3[%c64, %c0_8] : memref<208x32xf32, #tpu.memory_space<vmem>>, vector<16x32xf32>
    %cst_9 = arith.constant dense<0.000000e+00> : vector<16x256xf32>
    %21 = tpu.matmul %20, %19, %cst_9 {dimension_numbers = #tpu.dot_dimension_numbers<[1], [0], [0], [1], [0, 0, 1, 1], [], []>} : vector<16x32xf32>, vector<32x256xf32>, vector<16x256xf32> -> vector<16x256xf32>
    %22 = vector.broadcast %3 : vector<16x1xf32> to vector<16x256xf32>
    %23 = arith.addf %21, %22 : vector<16x256xf32>
    %24 = vector.extract_strided_slice %23 {offsets = [0, 0], sizes = [8, 256], strides = [1, 1]} : vector<16x256xf32> to vector<8x256xf32>
    %25 = vector.extract_strided_slice %23 {offsets = [8, 0], sizes = [8, 256], strides = [1, 1]} : vector<16x256xf32> to vector<8x256xf32>
    %26 = math.exp %25 : vector<8x256xf32>
    %c0_10 = arith.constant 0 : index
    %c0_11 = arith.constant 0 : index
    %27 = vector.load %arg2[%c0_10, %c0_11] : memref<8x256xf32, #tpu.memory_space<vmem>>, vector<8x256xf32>
    %28 = arith.mulf %26, %27 : vector<8x256xf32>
    %29 = arith.addf %24, %28 : vector<8x256xf32>
    %c80 = arith.constant 80 : index
    %c0_12 = arith.constant 0 : index
    %30 = vector.load %arg3[%c80, %c0_12] : memref<208x32xf32, #tpu.memory_space<vmem>>, vector<32x8xf32>
    %cst_13 = arith.constant dense<0.000000e+00> : vector<32x256xf32>
    %31 = tpu.matmul %30, %29, %cst_13 {dimension_numbers = #tpu.dot_dimension_numbers<[1], [0], [0], [1], [0, 0, 1, 1], [], []>} : vector<32x8xf32>, vector<8x256xf32>, vector<32x256xf32> -> vector<32x256xf32>
    %32 = vector.broadcast %4 : vector<32x1xf32> to vector<32x256xf32>
    %33 = arith.addf %31, %32 : vector<32x256xf32>
    %cst_14 = arith.constant 0.000000e+00 : f32
    %34 = vector.broadcast %cst_14 : f32 to vector<32x256xf32>
    %35 = arith.maximumf %33, %34 : vector<32x256xf32>
    %c112 = arith.constant 112 : index
    %c0_15 = arith.constant 0 : index
    %36 = vector.load %arg3[%c112, %c0_15] : memref<208x32xf32, #tpu.memory_space<vmem>>, vector<32x32xf32>
    %cst_16 = arith.constant dense<0.000000e+00> : vector<32x256xf32>
    %37 = tpu.matmul %36, %35, %cst_16 {dimension_numbers = #tpu.dot_dimension_numbers<[1], [0], [0], [1], [0, 0, 1, 1], [], []>} : vector<32x32xf32>, vector<32x256xf32>, vector<32x256xf32> -> vector<32x256xf32>
    %38 = vector.broadcast %5 : vector<32x1xf32> to vector<32x256xf32>
    %39 = arith.addf %37, %38 : vector<32x256xf32>
    %cst_17 = arith.constant 0.000000e+00 : f32
    %40 = vector.broadcast %cst_17 : f32 to vector<32x256xf32>
    %41 = arith.maximumf %39, %40 : vector<32x256xf32>
    %c144 = arith.constant 144 : index
    %c0_18 = arith.constant 0 : index
    %42 = vector.load %arg3[%c144, %c0_18] : memref<208x32xf32, #tpu.memory_space<vmem>>, vector<32x32xf32>
    %cst_19 = arith.constant dense<0.000000e+00> : vector<32x256xf32>
    %43 = tpu.matmul %42, %41, %cst_19 {dimension_numbers = #tpu.dot_dimension_numbers<[1], [0], [0], [1], [0, 0, 1, 1], [], []>} : vector<32x32xf32>, vector<32x256xf32>, vector<32x256xf32> -> vector<32x256xf32>
    %44 = vector.broadcast %6 : vector<32x1xf32> to vector<32x256xf32>
    %45 = arith.addf %43, %44 : vector<32x256xf32>
    %46 = tpu.iota {dimensions = array<i32: 0>} : vector<32x256xi32>
    %c30_i32 = arith.constant 30 : i32
    %47 = vector.broadcast %c30_i32 : i32 to vector<32x256xi32>
    %48 = arith.cmpi eq, %46, %47 : vector<32x256xi32>
    %49 = arith.negf %45 : vector<32x256xf32>
    %50 = math.exp %49 : vector<32x256xf32>
    %cst_20 = arith.constant 1.000000e+00 : f32
    %51 = vector.broadcast %cst_20 : f32 to vector<32x256xf32>
    %52 = arith.addf %51, %50 : vector<32x256xf32>
    %53 = arith.divf %51, %52 : vector<32x256xf32>
    %54 = arith.select %48, %53, %45 : vector<32x256xi1>, vector<32x256xf32>
    %c0_21 = arith.constant 0 : index
    %c0_22 = arith.constant 0 : index
    %55 = vector.load %arg4[%c0_21, %c0_22] : memref<32x256xf32, #tpu.memory_space<vmem>>, vector<32x256xf32>
    tpu.vector_store %arg4[%c0_21, %c0_22], %54 {strides = array<i32>} : memref<32x256xf32, #tpu.memory_space<vmem>>, vector<32x256xf32>,
    return
  }
  func.func @transform_0(%arg0: i32) -> (i32, i32) {
    %c0_i32 = arith.constant 0 : i32
    %c0_i32_0 = arith.constant 0 : i32
    return %c0_i32, %arg0 : i32, i32
  }
  func.func @transform_1(%arg0: i32) -> (i32, i32) {
    %c0_i32 = arith.constant 0 : i32
    %c0_i32_0 = arith.constant 0 : i32
    return %c0_i32, %arg0 : i32, i32
  }
  func.func @transform_2(%arg0: i32) -> (i32, i32) {
    %c0_i32 = arith.constant 0 : i32
    %c0_i32_0 = arith.constant 0 : i32
    %c0_i32_1 = arith.constant 0 : i32
    return %c0_i32, %c0_i32_0 : i32, i32
  }
  func.func @transform_3(%arg0: i32) -> (i32, i32) {
    %c0_i32 = arith.constant 0 : i32
    %c0_i32_0 = arith.constant 0 : i32
    return %c0_i32, %arg0 : i32, i32
  }
}

</mosaic_0001>

<llo_original>
// kernel: tpu_custom_call.1
$region0: #{tpu_custom_call.1}
  #allocation0 [shape = 'u32[]', space=smem, size = 0x4, offset = 0x4, fixed_abs, tag = 'smem constant byte address 0x4 - core index']
  #allocation1 [shape = 'u32[72,128]{1,0:T(1,128)}', space=vmem, size = 0x9000, scoped, tag = 'internal scratch']
  %s0 = inlined_call_operand.vmem [shape: f32[16,512], index: 0, kind: input, shape index: {}]
  %s1 = inlined_call_operand.vmem [shape: f32[8,512], index: 1, kind: input, shape index: {}]
  %s2 = inlined_call_operand.vmem [shape: f32[208,32], index: 2, kind: input, shape index: {}]
  %s3 = inlined_call_operand.hbm [shape: f32[32,512], index: 3, kind: output, shape index: {}]
  %s4 = sld [smem:[#allocation0]]
  $region68: #{tpu_custom_call.1} parent=0
    _
  %s6 = ssub.s32 1, %s4
  %s7 = scalar_select 0, %s6, %s4
  $region1: #{tpu_custom_call.1} parent=0
    #allocation2 [shape = 'u8[32768]{0}', space=vmem, size = 0x8000, scoped, tag = 'input window, operand 0']
    #allocation3 [shape = 'u8[65536]{0}', space=vmem, size = 0x10000, scoped, tag = 'output window, operand 0']
    #allocation4 [shape = 's32[2]{0}', space=sflag, size = 0x8, scoped, tag = 'scoped memory for tpu_custom_call.1']
    %8 = vsyncpa [#allocation4], 0
    %s9 = scalar_lea.sflag [#allocation4], 1
    %10 = vsyncpa %s9, 0
    loop: start=0, step=1, limit=4
    $region2: #{tpu_custom_call.1} parent=1 // loop_pre_header
      _
    $region3: #{tpu_custom_call.1} parent=1 // loop_header
      %s12 = sphi 0, %s16
      %p13 = scmp.ge.s32.totalorder %s12, 4
      %s22 = sphi 0, %s24
      %s25 = sphi 0, %s22
      %s26 = sphi 0, %s25
      %s42 = sphi 0, %s26
      %s48 = sphi 0, %s50
      %s51 = sphi 0, %s48
      %s52 = sphi 0, %s51
      %s68 = sphi 0, %s52
      %s72 = sphi 0, %s72
      %s74 = sphi 0, %s72
      %s75 = sphi 0, %s74
      %s89 = sphi 0, %s75
      %s95 = sphi 0, %s97
      %s98 = sphi 0, %s95
      %s99 = sphi 0, %s98
      %s115 = sphi 0, %s99
    $region4: #{tpu_custom_call.1} parent=1 // loop_header_branch
      %15 = sbr.rel (%p13) target = $region8
    $region5: #{tpu_custom_call.1} parent=1 // loop_body
      %s17 = ssub.s32 %s12, 1
      %s18 = ssub.s32 %s12, 2
      %s19 = sadd.s32 %s12, 1
      %s20 = ssub.s32 %s12, %s19
      %p21 = scmp.eq.s32.totalorder %s20, 0
      %s23 = sadd.s32 %s22, 1
      %s24 = scalar_select %p21, %s22, %s23
      %p27 = pneg %p21
      %p28 = scmp.eq.s32.totalorder %s12, 1
      %p29 = por %p27, %p28
      %p30 = scmp.ne.s32.totalorder %s22, %s25
      %p31 = scmp.eq.s32.totalorder %s12, 0
      %p32 = por %p30, %p31
      %p33 = scmp.ne.s32.totalorder %s22, %s25
      %p34 = scmp.eq.s32.totalorder %s17, 1
      %p35 = por %p33, %p34
      %p36 = scmp.ne.s32.totalorder %s25, %s26
      %p37 = scmp.eq.s32.totalorder %s17, 0
      %p38 = por %p36, %p37
      %p39 = scmp.ne.s32.totalorder %s25, %s26
      %p40 = scmp.eq.s32.totalorder %s18, 1
      %p41 = por %p39, %p40
      %p43 = scmp.ne.s32.totalorder %s26, %s42
      %p44 = scmp.eq.s32.totalorder %s18, 0
      %p45 = por %p43, %p44
      %s46 = ssub.s32 %s12, %s19
      %p47 = scmp.eq.s32.totalorder %s46, 0
      %s49 = sadd.s32 %s48, 1
      %s50 = scalar_select %p47, %s48, %s49
      %p53 = pneg %p47
      %p54 = scmp.eq.s32.totalorder %s12, 1
      %p55 = por %p53, %p54
      %p56 = scmp.ne.s32.totalorder %s48, %s51
      %p57 = scmp.eq.s32.totalorder %s12, 0
      %p58 = por %p56, %p57
      %p59 = scmp.ne.s32.totalorder %s48, %s51
      %p60 = scmp.eq.s32.totalorder %s17, 1
      %p61 = por %p59, %p60
      %p62 = scmp.ne.s32.totalorder %s51, %s52
      %p63 = scmp.eq.s32.totalorder %s17, 0
      %p64 = por %p62, %p63
      %p65 = scmp.ne.s32.totalorder %s51, %s52
      %p66 = scmp.eq.s32.totalorder %s18, 1
      %p67 = por %p65, %p66
      %p69 = scmp.ne.s32.totalorder %s52, %s68
      %p70 = scmp.eq.s32.totalorder %s18, 0
      %p71 = por %p69, %p70
      %s73 = sadd.s32 %s72, 1
      %p76 = scmp.eq.s32.totalorder %s12, 1
      %p77 = scmp.ne.s32.totalorder %s72, %s74
      %p78 = scmp.eq.s32.totalorder %s12, 0
      %p79 = por %p77, %p78
      %p80 = scmp.ne.s32.totalorder %s72, %s74
      %p81 = scmp.eq.s32.totalorder %s17, 1
      %p82 = por %p80, %p81
      %p83 = scmp.ne.s32.totalorder %s74, %s75
      %p84 = scmp.eq.s32.totalorder %s17, 0
      %p85 = por %p83, %p84
      %p86 = scmp.ne.s32.totalorder %s74, %s75
      %p87 = scmp.eq.s32.totalorder %s18, 1
      %p88 = por %p86, %p87
      %p90 = scmp.ne.s32.totalorder %s75, %s89
      %p91 = scmp.eq.s32.totalorder %s18, 0
      %p92 = por %p90, %p91
      %s93 = ssub.s32 %s12, %s19
      %p94 = scmp.eq.s32.totalorder %s93, 0
      %s96 = sadd.s32 %s95, 1
      %s97 = scalar_select %p94, %s95, %s96
      %p100 = pneg %p94
      %p101 = scmp.eq.s32.totalorder %s12, 1
      %p102 = por %p100, %p101
      %p103 = scmp.ne.s32.totalorder %s95, %s98
      %p104 = scmp.eq.s32.totalorder %s12, 0
      %p105 = por %p103, %p104
      %p106 = scmp.ne.s32.totalorder %s95, %s98
      %p107 = scmp.eq.s32.totalorder %s17, 1
      %p108 = por %p106, %p107
      %p109 = scmp.ne.s32.totalorder %s98, %s99
      %p110 = scmp.eq.s32.totalorder %s17, 0
      %p111 = por %p109, %p110
      %p112 = scmp.ne.s32.totalorder %s98, %s99
      %p113 = scmp.eq.s32.totalorder %s18, 1
      %p114 = por %p112, %p113
      %p116 = scmp.ne.s32.totalorder %s99, %s115
      %p117 = scmp.eq.s32.totalorder %s18, 0
      %p118 = por %p116, %p117
      %p119 = scmp.le.s32.totalorder 1, %s12
      %p120 = scmp.lt.s32.totalorder %s12, 3
      %p121 = pnand %p119, %p120
      %p122 = pneg %p121
      // Predicated region
      $region9: #{tpu_custom_call.1} parent=5 // pred_check
        _
      $region10: #{tpu_custom_call.1} parent=5 // pred_check_branch
        %124 = sbr.rel (%p121) target = $region12
      $region11: #{tpu_custom_call.1} parent=5 // pred_region
        %s125 = ssub.s32 %s12, 1
        // Predicated region
        $region13: #{tpu_custom_call.1} parent=11 // pred_check
          %p126 = pneg %p85
        $region14: #{tpu_custom_call.1} parent=11 // pred_check_branch
          %128 = sbr.rel (%p126) target = $region16
        $region15: #{tpu_custom_call.1} parent=11 // pred_region
          _
        $region16: #{tpu_custom_call.1} parent=11 // pred_fallthru
          _
      $region12: #{tpu_custom_call.1} parent=5 // pred_fallthru
        _
      %p129 = scmp.lt.s32.totalorder %s12, 2
      // Predicated region
      $region17: #{tpu_custom_call.1} parent=5 // pred_check
        %p130 = pneg %p129
      $region18: #{tpu_custom_call.1} parent=5 // pred_check_branch
        %132 = sbr.rel (%p130) target = $region20
      $region19: #{tpu_custom_call.1} parent=5 // pred_region
        // Predicated region
        $region21: #{tpu_custom_call.1} parent=19 // pred_check
          %p133 = pneg %p32
        $region22: #{tpu_custom_call.1} parent=19 // pred_check_branch
          %135 = sbr.rel (%p133) target = $region24
        $region23: #{tpu_custom_call.1} parent=19 // pred_region
          %s136 = sand.u32 %s22, 1
          %s137 = sand.u32 %s22, 1
          %s138 = smul.addr %s137, 32
          %s139 = scalar_lea.vmem [#allocation2], %s138
          %s140 = smul.u32 2, %s12
          %s141 = smul.addr %s140, 8
          %s142 = scalar_lea.vmem %s0, %s141
          // Predicated region
          $region25: #{tpu_custom_call.1} parent=23 // pred_check
            _
          $region26: #{tpu_custom_call.1} parent=23 // pred_check_branch
            %144 = sbr.rel (0) target = $region28
          $region27: #{tpu_custom_call.1} parent=23 // pred_region
            // Predicated region
            $region29: #{tpu_custom_call.1} parent=27 // pred_check
              _
            $region30: #{tpu_custom_call.1} parent=27 // pred_check_branch
              %146 = sbr.rel (0) target = $region32
            $region31: #{tpu_custom_call.1} parent=27 // pred_region
              loop: start=0, step=1, limit=1
              $region33: #{tpu_custom_call.1} parent=31 // loop_pre_header
                _
              $region34: #{tpu_custom_call.1} parent=31 // loop_header
                %s148 = sphi 0, %s152
                %p149 = scmp.ge.s32.totalorder %s148, 1
                %s153 = sphi %s142, %s142
                %s154 = sphi %s139, %s139
              $region35: #{tpu_custom_call.1} parent=31 // loop_header_branch
                %151 = sbr.rel (%p149) target = $region39
              $region36: #{tpu_custom_call.1} parent=31 // loop_body
                %v155 = vld [vmem:[%s153] sm:$0xff]
                %156 = vst [vmem:[%s154] sm:$0xff] %v155
                %v157 = vld [vmem:[%s153 + $0x8] sm:$0xff]
                %158 = vst [vmem:[%s154 + $0x8] sm:$0xff] %v157
                %v159 = vld [vmem:[%s153 + $0x20] sm:$0xff]
                %160 = vst [vmem:[%s154 + $0x10] sm:$0xff] %v159
                %v161 = vld [vmem:[%s153 + $0x28] sm:$0xff]
                %162 = vst [vmem:[%s154 + $0x18] sm:$0xff] %v161
              $region37: #{tpu_custom_call.1} parent=31 // loop_footer
                %s152 = sadd.s32 1, %s148
              $region38: #{tpu_custom_call.1} parent=31 // loop_footer_branch
                %147 = sbr.rel target = $region34
              $region39: #{tpu_custom_call.1} parent=31 // loop_exit
                _
            $region32: #{tpu_custom_call.1} parent=27 // pred_fallthru
              _
            // Predicated region
            $region40: #{tpu_custom_call.1} parent=27 // pred_check
              _
            $region41: #{tpu_custom_call.1} parent=27 // pred_check_branch
              %164 = sbr.rel target = $region43
            $region42: #{tpu_custom_call.1} parent=27 // pred_region
              _
            $region43: #{tpu_custom_call.1} parent=27 // pred_fallthru
              _
          $region28: #{tpu_custom_call.1} parent=23 // pred_fallthru
            _
          %165 = vnop
        $region24: #{tpu_custom_call.1} parent=19 // pred_fallthru
          _
        // Predicated region
        $region44: #{tpu_custom_call.1} parent=19 // pred_check
          %p166 = pneg %p58
        $region45: #{tpu_custom_call.1} parent=19 // pred_check_branch
          %168 = sbr.rel (%p166) target = $region47
        $region46: #{tpu_custom_call.1} parent=19 // pred_region
          %s169 = smul.u32 2, %s12
          %p170 = scmp.lt.s32.totalorder %s169, 3
          %s171 = scalar_select %p170, %s169, 3
          %s172 = smul.addr %s171, 8
          %s173 = scalar_lea.vmem %s1, %s172
          %s174 = smul.u32 2, %s12
        $region47: #{tpu_custom_call.1} parent=19 // pred_fallthru
          _
      $region20: #{tpu_custom_call.1} parent=5 // pred_fallthru
        _
      %p175 = scmp.le.s32.totalorder 1, %s12
      %p176 = scmp.lt.s32.totalorder %s12, 3
      %p177 = pnand %p175, %p176
      %p178 = pneg %p177
      // Predicated region
      $region48: #{tpu_custom_call.1} parent=5 // pred_check
        _
      $region49: #{tpu_custom_call.1} parent=5 // pred_check_branch
        %180 = sbr.rel (%p177) target = $region51
      $region50: #{tpu_custom_call.1} parent=5 // pred_region
        %s181 = ssub.s32 %s12, 1
        %s182 = sand.u32 %s25, 1
        %s183 = sand.u32 %s25, 1
        %s184 = smul.addr %s183, 32
        %s185 = scalar_lea.vmem [#allocation2], %s184
        // Predicated region
        $region52: #{tpu_custom_call.1} parent=50 // pred_check
          %p186 = pneg %p38
        $region53: #{tpu_custom_call.1} parent=50 // pred_check_branch
          %188 = sbr.rel (%p186) target = $region55
        $region54: #{tpu_custom_call.1} parent=50 // pred_region
          _
        $region55: #{tpu_custom_call.1} parent=50 // pred_fallthru
          _
        %s189 = sand.u32 %s25, 1
        %s190 = sand.u32 %s25, 1
        %s191 = smul.addr %s190, 32
        %s192 = scalar_lea.vmem [#allocation2], %s191
        %p193 = pneg %p38
        %p194 = pneg %p35
        %s195 = smul.u32 2, %s17
        %p196 = scmp.lt.s32.totalorder %s195, 3
        %s197 = scalar_select %p196, %s195, 3
        %s198 = smul.addr %s197, 8
        %s199 = scalar_lea.vmem %s1, %s198
        %p200 = pneg %p64
        %p201 = pneg %p61
        %p202 = pneg %p85
        %p203 = pneg %p82
        %p204 = pneg %p111
        %p205 = pneg %p108
        %s206 = sand.u32 %s98, 1
        %s207 = scalar_lea.sflag [#allocation4], %s206
        %s208 = sand.u32 %s98, 1
        %s209 = smul.addr %s208, 64
        %s210 = scalar_lea.vmem [#allocation3], %s209
        %s211 = smul.u32 2, %s17
        %s212 = smul.u32 2, %s17
        %p213 = scmp.lt.s32.totalorder %s212, 3
        %s214 = scalar_select %p213, %s212, 3
        %s215 = smul.addr %s214, 8
        %s216 = scalar_lea.vmem %s1, %s215
        %s217 = smul.u32 2, %s17
        %s218 = smul.u32 2, %s17
        %v219 = vld [vmem:[%s2 + $0xb0] sm:$0xff]
        %v220 = vld [vmem:[%s2 + $0xb8] sm:$0xff]
        %v221 = vld [vmem:[%s2 + $0xc0] sm:$0xff]
        %v222 = vld [vmem:[%s2 + $0xc8] sm:$0xff]
        %v223 = vld [vmem:[%s185] sm:$0xff]
        %v224 = vld [vmem:[%s185 + $0x8] sm:$0xff]
        %v225 = vld [vmem:[%s185 + $0x10] sm:$0xff]
        %v226 = vld [vmem:[%s185 + $0x18] sm:$0xff]
        %v227 = vld [vmem:[%s2] sm:$0xff]
        %v228 = vld [vmem:[%s2 + $0x8] sm:$0xff]
        %v229 = vld [vmem:[%s2 + $0x10] sm:$0xff]
        %v230 = vld [vmem:[%s2 + $0x18] sm:$0xff]
        %232 = vset.pattern.permute.xlu0 0
        %233 = vperm.xlu0 %232, %v219
        %v234 = vpop.permute.xlu0 %233
        %237 = vset.pattern.permute.xlu0 0
        %238 = vperm.xlu0 %237, %v220
        %v239 = vpop.permute.xlu0 %238
        %242 = vset.pattern.permute.xlu0 0
        %243 = vperm.xlu0 %242, %v221
        %v244 = vpop.permute.xlu0 %243
        %247 = vset.pattern.permute.xlu0 0
        %248 = vperm.xlu0 %247, %v222
        %v249 = vpop.permute.xlu0 %248
        %vm251 = vcmask 130048
        %v253 = vsel %vm251, %v227, 0
        %v256 = vsel %vm251, %v228, 0
        %v259 = vsel %vm251, %v229, 0
        %v262 = vsel %vm251, %v230, 0
        %264 = vmatpush.msra.mxu0 0.0
        %265 = vmatpush.msra.mxu0 0.0
        %266 = vmatpush.msra.mxu0 0.0
        %267 = vmatpush.msra.mxu0 0.0
        %268 = vmatpush.msra.mxu0 0.0
        %269 = vmatpush.msra.mxu0 0.0
        %270 = vmatpush.msra.mxu0 0.0
        %271 = vmatpush.msra.mxu0 0.0
        %272 = vmatpush.msra.mxu0 0.0
        %273 = vmatpush.msra.mxu0 0.0
        %274 = vmatpush.msra.mxu0 0.0
        %275 = vmatpush.msra.mxu0 0.0
        %276 = vmatpush.msra.mxu0 0.0
        %277 = vmatpush.msra.mxu0 0.0
        %278 = vmatpush.msra.mxu0 %v225
        %279 = vmatpush.msra.mxu0 %v223
        %280 = vmatmul.f32.gmra.mxu0 %v253
        %v281 = vpop.f32.mrf.mxu0
        %v282 = vadd.f32 %v234, %v281
        %283 = vmatmul.f32.gmra.mxu0 %v256
        %v284 = vpop.f32.mrf.mxu0
        %v285 = vadd.f32 %v239, %v284
        %286 = vmatmul.f32.gmra.mxu0 %v259
        %v287 = vpop.f32.mrf.mxu0
        %v288 = vadd.f32 %v244, %v287
        %289 = vmatmul.f32.gmra.mxu0 %v262
        %v290 = vpop.f32.mrf.mxu0
        %v291 = vadd.f32 %v249, %v290
        %292 = vdwg.mxu0
        %293 = vmatpush.msra.mxu0 0.0
        %294 = vmatpush.msra.mxu0 0.0
        %295 = vmatpush.msra.mxu0 0.0
        %296 = vmatpush.msra.mxu0 0.0
        %297 = vmatpush.msra.mxu0 0.0
        %298 = vmatpush.msra.mxu0 0.0
        %299 = vmatpush.msra.mxu0 0.0
        %300 = vmatpush.msra.mxu0 0.0
        %301 = vmatpush.msra.mxu0 0.0
        %302 = vmatpush.msra.mxu0 0.0
        %303 = vmatpush.msra.mxu0 0.0
        %304 = vmatpush.msra.mxu0 0.0
        %305 = vmatpush.msra.mxu0 0.0
        %306 = vmatpush.msra.mxu0 0.0
        %307 = vmatpush.msra.mxu0 %v226
        %308 = vmatpush.msra.mxu0 %v224
        %309 = vmatmul.f32.gmra.mxu0 %v253
        %v310 = vpop.f32.mrf.mxu0
        %v311 = vadd.f32 %v234, %v310
        %312 = vmatmul.f32.gmra.mxu0 %v256
        %v313 = vpop.f32.mrf.mxu0
        %v314 = vadd.f32 %v239, %v313
        %315 = vmatmul.f32.gmra.mxu0 %v259
        %v316 = vpop.f32.mrf.mxu0
        %v317 = vadd.f32 %v244, %v316
        %318 = vmatmul.f32.gmra.mxu0 %v262
        %v319 = vpop.f32.mrf.mxu0
        %v320 = vadd.f32 %v249, %v319
        %321 = vdwg.mxu0
        %v322 = vmax.f32 %v282, 0.0
        %v323 = vmax.f32 %v311, 0.0
        %v324 = vmax.f32 %v285, 0.0
        %v325 = vmax.f32 %v314, 0.0
        %v326 = vmax.f32 %v288, 0.0
        %v327 = vmax.f32 %v317, 0.0
        %v328 = vmax.f32 %v291, 0.0
        %v329 = vmax.f32 %v320, 0.0
        %v330 = vld [vmem:[%s2 + $0x20] sm:$0xff]
        %v331 = vld [vmem:[%s2 + $0x28] sm:$0xff]
        %v332 = vld [vmem:[%s2 + $0x30] sm:$0xff]
        %v333 = vld [vmem:[%s2 + $0x38] sm:$0xff]
        %334 = vset.pattern.permute.xlu0 1
        %335 = vperm.xlu0 %334, %v219
        %v336 = vpop.permute.xlu0 %335
        %338 = vset.pattern.permute.xlu0 1
        %339 = vperm.xlu0 %338, %v220
        %v340 = vpop.permute.xlu0 %339
        %342 = vset.pattern.permute.xlu0 1
        %343 = vperm.xlu0 %342, %v221
        %v344 = vpop.permute.xlu0 %343
        %346 = vset.pattern.permute.xlu0 1
        %347 = vperm.xlu0 %346, %v222
        %v348 = vpop.permute.xlu0 %347
        %vm350 = vcmask 261120
        %v352 = vsel %vm350, %v330, 0
        %v355 = vsel %vm350, %v331, 0
        %v358 = vsel %vm350, %v332, 0
        %v361 = vsel %vm350, %v333, 0
        %363 = vmatpush.msra.mxu0 0.0
        %364 = vmatpush.msra.mxu0 0.0
        %365 = vmatpush.msra.mxu0 0.0
        %366 = vmatpush.msra.mxu0 0.0
        %367 = vmatpush.msra.mxu0 0.0
        %368 = vmatpush.msra.mxu0 0.0
        %369 = vmatpush.msra.mxu0 0.0
        %370 = vmatpush.msra.mxu0 0.0
        %371 = vmatpush.msra.mxu0 0.0
        %372 = vmatpush.msra.mxu0 0.0
        %373 = vmatpush.msra.mxu0 0.0
        %374 = vmatpush.msra.mxu0 0.0
        %375 = vmatpush.msra.mxu0 %v328
        %376 = vmatpush.msra.mxu0 %v326
        %377 = vmatpush.msra.mxu0 %v324
        %378 = vmatpush.msra.mxu0 %v322
        %379 = vmatmul.f32.gmra.mxu0 %v352
        %v380 = vpop.f32.mrf.mxu0
        %v381 = vadd.f32 %v336, %v380
        %382 = vmatmul.f32.gmra.mxu0 %v355
        %v383 = vpop.f32.mrf.mxu0
        %v384 = vadd.f32 %v340, %v383
        %385 = vmatmul.f32.gmra.mxu0 %v358
        %v386 = vpop.f32.mrf.mxu0
        %v387 = vadd.f32 %v344, %v386
        %388 = vmatmul.f32.gmra.mxu0 %v361
        %v389 = vpop.f32.mrf.mxu0
        %v390 = vadd.f32 %v348, %v389
        %391 = vdwg.mxu0
        %392 = vmatpush.msra.mxu0 0.0
        %393 = vmatpush.msra.mxu0 0.0
        %394 = vmatpush.msra.mxu0 0.0
        %395 = vmatpush.msra.mxu0 0.0
        %396 = vmatpush.msra.mxu0 0.0
        %397 = vmatpush.msra.mxu0 0.0
        %398 = vmatpush.msra.mxu0 0.0
        %399 = vmatpush.msra.mxu0 0.0
        %400 = vmatpush.msra.mxu0 0.0
        %401 = vmatpush.msra.mxu0 0.0
        %402 = vmatpush.msra.mxu0 0.0
        %403 = vmatpush.msra.mxu0 0.0
        %404 = vmatpush.msra.mxu0 %v329
        %405 = vmatpush.msra.mxu0 %v327
        %406 = vmatpush.msra.mxu0 %v325
        %407 = vmatpush.msra.mxu0 %v323
        %408 = vmatmul.f32.gmra.mxu0 %v352
        %v409 = vpop.f32.mrf.mxu0
        %v410 = vadd.f32 %v336, %v409
        %411 = vmatmul.f32.gmra.mxu0 %v355
        %v412 = vpop.f32.mrf.mxu0
        %v413 = vadd.f32 %v340, %v412
        %414 = vmatmul.f32.gmra.mxu0 %v358
        %v415 = vpop.f32.mrf.mxu0
        %v416 = vadd.f32 %v344, %v415
        %417 = vmatmul.f32.gmra.mxu0 %v361
        %v418 = vpop.f32.mrf.mxu0
        %v419 = vadd.f32 %v348, %v418
        %420 = vdwg.mxu0
        %v421 = vmax.f32 %v381, 0.0
        %v422 = vmax.f32 %v410, 0.0
        %v423 = vmax.f32 %v384, 0.0
        %v424 = vmax.f32 %v413, 0.0
        %v425 = vmax.f32 %v387, 0.0
        %v426 = vmax.f32 %v416, 0.0
        %v427 = vmax.f32 %v390, 0.0
        %v428 = vmax.f32 %v419, 0.0
        %v429 = vld [vmem:[%s2 + $0x40] sm:$0xff]
        %v430 = vld [vmem:[%s2 + $0x48] sm:$0xff]
        %431 = vset.pattern.permute.xlu0 2
        %432 = vperm.xlu0 %431, %v219
        %v433 = vpop.permute.xlu0 %432
        %435 = vset.pattern.permute.xlu0 2
        %436 = vperm.xlu0 %435, %v220
        %v437 = vpop.permute.xlu0 %436
        %v440 = vsel %vm350, %v429, 0
        %v443 = vsel %vm350, %v430, 0
        %445 = vmatpush.msra.mxu0 0.0
        %446 = vmatpush.msra.mxu0 0.0
        %447 = vmatpush.msra.mxu0 0.0
        %448 = vmatpush.msra.mxu0 0.0
        %449 = vmatpush.msra.mxu0 0.0
        %450 = vmatpush.msra.mxu0 0.0
        %451 = vmatpush.msra.mxu0 0.0
        %452 = vmatpush.msra.mxu0 0.0
        %453 = vmatpush.msra.mxu0 0.0
        %454 = vmatpush.msra.mxu0 0.0
        %455 = vmatpush.msra.mxu0 0.0
        %456 = vmatpush.msra.mxu0 0.0
        %457 = vmatpush.msra.mxu0 %v427
        %458 = vmatpush.msra.mxu0 %v425
        %459 = vmatpush.msra.mxu0 %v423
        %460 = vmatpush.msra.mxu0 %v421
        %461 = vmatmul.f32.gmra.mxu0 %v440
        %v462 = vpop.f32.mrf.mxu0
        %v463 = vadd.f32 %v433, %v462
        %464 = vmatmul.f32.gmra.mxu0 %v443
        %v465 = vpop.f32.mrf.mxu0
        %v466 = vadd.f32 %v437, %v465
        %467 = vdwg.mxu0
        %468 = vmatpush.msra.mxu0 0.0
        %469 = vmatpush.msra.mxu0 0.0
        %470 = vmatpush.msra.mxu0 0.0
        %471 = vmatpush.msra.mxu0 0.0
        %472 = vmatpush.msra.mxu0 0.0
        %473 = vmatpush.msra.mxu0 0.0
        %474 = vmatpush.msra.mxu0 0.0
        %475 = vmatpush.msra.mxu0 0.0
        %476 = vmatpush.msra.mxu0 0.0
        %477 = vmatpush.msra.mxu0 0.0
        %478 = vmatpush.msra.mxu0 0.0
        %479 = vmatpush.msra.mxu0 0.0
        %480 = vmatpush.msra.mxu0 %v428
        %481 = vmatpush.msra.mxu0 %v426
        %482 = vmatpush.msra.mxu0 %v424
        %483 = vmatpush.msra.mxu0 %v422
        %484 = vmatmul.f32.gmra.mxu0 %v440
        %v485 = vpop.f32.mrf.mxu0
        %v486 = vadd.f32 %v433, %v485
        %487 = vmatmul.f32.gmra.mxu0 %v443
        %v488 = vpop.f32.mrf.mxu0
        %v489 = vadd.f32 %v437, %v488
        %490 = vdwg.mxu0
        %v491 = vmul.f32 %v466, 1.442695
        %v492 = vpow.pop %v491
        %v493 = vmul.f32 %v489, 1.442695
        %v494 = vpow.pop %v493
        %v495 = vld [vmem:[%s216] sm:$0xff]
        %v496 = vld [vmem:[%s216 + $0x8] sm:$0xff]
        %v497 = vmul.f32 %v492, %v495
        %v498 = vmul.f32 %v494, %v496
        %v499 = vadd.f32 %v463, %v497
        %v500 = vadd.f32 %v486, %v498
        %v501 = vld [vmem:[%s2 + $0x50] sm:$0xff]
        %v502 = vld [vmem:[%s2 + $0x58] sm:$0xff]
        %v503 = vld [vmem:[%s2 + $0x60] sm:$0xff]
        %v504 = vld [vmem:[%s2 + $0x68] sm:$0xff]
        %505 = vset.pattern.permute.xlu0 3
        %506 = vperm.xlu0 %505, %v219
        %v507 = vpop.permute.xlu0 %506
        %509 = vset.pattern.permute.xlu0 3
        %510 = vperm.xlu0 %509, %v220
        %v511 = vpop.permute.xlu0 %510
        %513 = vset.pattern.permute.xlu0 3
        %514 = vperm.xlu0 %513, %v221
        %v515 = vpop.permute.xlu0 %514
        %517 = vset.pattern.permute.xlu0 3
        %518 = vperm.xlu0 %517, %v222
        %v519 = vpop.permute.xlu0 %518
        %vm521 = vcmask 64512
        %v523 = vsel %vm521, %v501, 0
        %v526 = vsel %vm521, %v502, 0
        %v529 = vsel %vm521, %v503, 0
        %v532 = vsel %vm521, %v504, 0
        %534 = vmatpush.msra.mxu0 0.0
        %535 = vmatpush.msra.mxu0 0.0
        %536 = vmatpush.msra.mxu0 0.0
        %537 = vmatpush.msra.mxu0 0.0
        %538 = vmatpush.msra.mxu0 0.0
        %539 = vmatpush.msra.mxu0 0.0
        %540 = vmatpush.msra.mxu0 0.0
        %541 = vmatpush.msra.mxu0 0.0
        %542 = vmatpush.msra.mxu0 0.0
        %543 = vmatpush.msra.mxu0 0.0
        %544 = vmatpush.msra.mxu0 0.0
        %545 = vmatpush.msra.mxu0 0.0
        %546 = vmatpush.msra.mxu0 0.0
        %547 = vmatpush.msra.mxu0 0.0
        %548 = vmatpush.msra.mxu0 0.0
        %549 = vmatpush.msra.mxu0 %v499
        %550 = vmatmul.f32.gmra.mxu0 %v523
        %v551 = vpop.f32.mrf.mxu0
        %v552 = vadd.f32 %v507, %v551
        %553 = vmatmul.f32.gmra.mxu0 %v526
        %v554 = vpop.f32.mrf.mxu0
        %v555 = vadd.f32 %v511, %v554
        %556 = vmatmul.f32.gmra.mxu0 %v529
        %v557 = vpop.f32.mrf.mxu0
        %v558 = vadd.f32 %v515, %v557
        %559 = vmatmul.f32.gmra.mxu0 %v532
        %v560 = vpop.f32.mrf.mxu0
        %v561 = vadd.f32 %v519, %v560
        %562 = vdwg.mxu0
        %563 = vmatpush.msra.mxu0 0.0
        %564 = vmatpush.msra.mxu0 0.0
        %565 = vmatpush.msra.mxu0 0.0
        %566 = vmatpush.msra.mxu0 0.0
        %567 = vmatpush.msra.mxu0 0.0
        %568 = vmatpush.msra.mxu0 0.0
        %569 = vmatpush.msra.mxu0 0.0
        %570 = vmatpush.msra.mxu0 0.0
        %571 = vmatpush.msra.mxu0 0.0
        %572 = vmatpush.msra.mxu0 0.0
        %573 = vmatpush.msra.mxu0 0.0
        %574 = vmatpush.msra.mxu0 0.0
        %575 = vmatpush.msra.mxu0 0.0
        %576 = vmatpush.msra.mxu0 0.0
        %577 = vmatpush.msra.mxu0 0.0
        %578 = vmatpush.msra.mxu0 %v500
        %579 = vmatmul.f32.gmra.mxu0 %v523
        %v580 = vpop.f32.mrf.mxu0
        %v581 = vadd.f32 %v507, %v580
        %582 = vmatmul.f32.gmra.mxu0 %v526
        %v583 = vpop.f32.mrf.mxu0
        %v584 = vadd.f32 %v511, %v583
        %585 = vmatmul.f32.gmra.mxu0 %v529
        %v586 = vpop.f32.mrf.mxu0
        %v587 = vadd.f32 %v515, %v586
        %588 = vmatmul.f32.gmra.mxu0 %v532
        %v589 = vpop.f32.mrf.mxu0
        %v590 = vadd.f32 %v519, %v589
        %591 = vdwg.mxu0
        %v592 = vmax.f32 %v552, 0.0
        %v593 = vmax.f32 %v581, 0.0
        %v594 = vmax.f32 %v555, 0.0
        %v595 = vmax.f32 %v584, 0.0
        %v596 = vmax.f32 %v558, 0.0
        %v597 = vmax.f32 %v587, 0.0
        %v598 = vmax.f32 %v561, 0.0
        %v599 = vmax.f32 %v590, 0.0
        %v600 = vld [vmem:[%s2 + $0x70] sm:$0xff]
        %v601 = vld [vmem:[%s2 + $0x78] sm:$0xff]
        %v602 = vld [vmem:[%s2 + $0x80] sm:$0xff]
        %v603 = vld [vmem:[%s2 + $0x88] sm:$0xff]
        %604 = vset.pattern.permute.xlu0 4
        %605 = vperm.xlu0 %604, %v219
        %v606 = vpop.permute.xlu0 %605
        %608 = vset.pattern.permute.xlu0 4
        %609 = vperm.xlu0 %608, %v220
        %v610 = vpop.permute.xlu0 %609
        %612 = vset.pattern.permute.xlu0 4
        %613 = vperm.xlu0 %612, %v221
        %v614 = vpop.permute.xlu0 %613
        %616 = vset.pattern.permute.xlu0 4
        %617 = vperm.xlu0 %616, %v222
        %v618 = vpop.permute.xlu0 %617
        %v621 = vsel %vm350, %v600, 0
        %v624 = vsel %vm350, %v601, 0
        %v627 = vsel %vm350, %v602, 0
        %v630 = vsel %vm350, %v603, 0
        %632 = vmatpush.msra.mxu0 0.0
        %633 = vmatpush.msra.mxu0 0.0
        %634 = vmatpush.msra.mxu0 0.0
        %635 = vmatpush.msra.mxu0 0.0
        %636 = vmatpush.msra.mxu0 0.0
        %637 = vmatpush.msra.mxu0 0.0
        %638 = vmatpush.msra.mxu0 0.0
        %639 = vmatpush.msra.mxu0 0.0
        %640 = vmatpush.msra.mxu0 0.0
        %641 = vmatpush.msra.mxu0 0.0
        %642 = vmatpush.msra.mxu0 0.0
        %643 = vmatpush.msra.mxu0 0.0
        %644 = vmatpush.msra.mxu0 %v598
        %645 = vmatpush.msra.mxu0 %v596
        %646 = vmatpush.msra.mxu0 %v594
        %647 = vmatpush.msra.mxu0 %v592
        %648 = vmatmul.f32.gmra.mxu0 %v621
        %v649 = vpop.f32.mrf.mxu0
        %v650 = vadd.f32 %v606, %v649
        %651 = vmatmul.f32.gmra.mxu0 %v624
        %v652 = vpop.f32.mrf.mxu0
        %v653 = vadd.f32 %v610, %v652
        %654 = vmatmul.f32.gmra.mxu0 %v627
        %v655 = vpop.f32.mrf.mxu0
        %v656 = vadd.f32 %v614, %v655
        %657 = vmatmul.f32.gmra.mxu0 %v630
        %v658 = vpop.f32.mrf.mxu0
        %v659 = vadd.f32 %v618, %v658
        %660 = vdwg.mxu0
        %661 = vmatpush.msra.mxu0 0.0
        %662 = vmatpush.msra.mxu0 0.0
        %663 = vmatpush.msra.mxu0 0.0
        %664 = vmatpush.msra.mxu0 0.0
        %665 = vmatpush.msra.mxu0 0.0
        %666 = vmatpush.msra.mxu0 0.0
        %667 = vmatpush.msra.mxu0 0.0
        %668 = vmatpush.msra.mxu0 0.0
        %669 = vmatpush.msra.mxu0 0.0
        %670 = vmatpush.msra.mxu0 0.0
        %671 = vmatpush.msra.mxu0 0.0
        %672 = vmatpush.msra.mxu0 0.0
        %673 = vmatpush.msra.mxu0 %v599
        %674 = vmatpush.msra.mxu0 %v597
        %675 = vmatpush.msra.mxu0 %v595
        %676 = vmatpush.msra.mxu0 %v593
        %677 = vmatmul.f32.gmra.mxu0 %v621
        %v678 = vpop.f32.mrf.mxu0
        %v679 = vadd.f32 %v606, %v678
        %680 = vmatmul.f32.gmra.mxu0 %v624
        %v681 = vpop.f32.mrf.mxu0
        %v682 = vadd.f32 %v610, %v681
        %683 = vmatmul.f32.gmra.mxu0 %v627
        %v684 = vpop.f32.mrf.mxu0
        %v685 = vadd.f32 %v614, %v684
        %686 = vmatmul.f32.gmra.mxu0 %v630
        %v687 = vpop.f32.mrf.mxu0
        %v688 = vadd.f32 %v618, %v687
        %689 = vdwg.mxu0
        %v690 = vmax.f32 %v650, 0.0
        %v691 = vmax.f32 %v679, 0.0
        %v692 = vmax.f32 %v653, 0.0
        %v693 = vmax.f32 %v682, 0.0
        %v694 = vmax.f32 %v656, 0.0
        %v695 = vmax.f32 %v685, 0.0
        %v696 = vmax.f32 %v659, 0.0
        %v697 = vmax.f32 %v688, 0.0
        %v698 = vld [vmem:[%s2 + $0x90] sm:$0xff]
        %v699 = vld [vmem:[%s2 + $0x98] sm:$0xff]
        %v700 = vld [vmem:[%s2 + $0xa0] sm:$0xff]
        %v701 = vld [vmem:[%s2 + $0xa8] sm:$0xff]
        %702 = vset.pattern.permute.xlu0 5
        %703 = vperm.xlu0 %702, %v219
        %v704 = vpop.permute.xlu0 %703
        %706 = vset.pattern.permute.xlu0 5
        %707 = vperm.xlu0 %706, %v220
        %v708 = vpop.permute.xlu0 %707
        %710 = vset.pattern.permute.xlu0 5
        %711 = vperm.xlu0 %710, %v221
        %v712 = vpop.permute.xlu0 %711
        %714 = vset.pattern.permute.xlu0 5
        %715 = vperm.xlu0 %714, %v222
        %v716 = vpop.permute.xlu0 %715
        %v719 = vsel %vm350, %v698, 0
        %v722 = vsel %vm350, %v699, 0
        %v725 = vsel %vm350, %v700, 0
        %v728 = vsel %vm350, %v701, 0
        %730 = vmatpush.msra.mxu0 0.0
        %731 = vmatpush.msra.mxu0 0.0
        %732 = vmatpush.msra.mxu0 0.0
        %733 = vmatpush.msra.mxu0 0.0
        %734 = vmatpush.msra.mxu0 0.0
        %735 = vmatpush.msra.mxu0 0.0
        %736 = vmatpush.msra.mxu0 0.0
        %737 = vmatpush.msra.mxu0 0.0
        %738 = vmatpush.msra.mxu0 0.0
        %739 = vmatpush.msra.mxu0 0.0
        %740 = vmatpush.msra.mxu0 0.0
        %741 = vmatpush.msra.mxu0 0.0
        %742 = vmatpush.msra.mxu0 %v696
        %743 = vmatpush.msra.mxu0 %v694
        %744 = vmatpush.msra.mxu0 %v692
        %745 = vmatpush.msra.mxu0 %v690
        %746 = vmatmul.f32.gmra.mxu0 %v719
        %v747 = vpop.f32.mrf.mxu0
        %v748 = vadd.f32 %v704, %v747
        %749 = vmatmul.f32.gmra.mxu0 %v722
        %v750 = vpop.f32.mrf.mxu0
        %v751 = vadd.f32 %v708, %v750
        %752 = vmatmul.f32.gmra.mxu0 %v725
        %v753 = vpop.f32.mrf.mxu0
        %v754 = vadd.f32 %v712, %v753
        %755 = vmatmul.f32.gmra.mxu0 %v728
        %v756 = vpop.f32.mrf.mxu0
        %v757 = vadd.f32 %v716, %v756
        %758 = vdwg.mxu0
        %759 = vmatpush.msra.mxu0 0.0
        %760 = vmatpush.msra.mxu0 0.0
        %761 = vmatpush.msra.mxu0 0.0
        %762 = vmatpush.msra.mxu0 0.0
        %763 = vmatpush.msra.mxu0 0.0
        %764 = vmatpush.msra.mxu0 0.0
        %765 = vmatpush.msra.mxu0 0.0
        %766 = vmatpush.msra.mxu0 0.0
        %767 = vmatpush.msra.mxu0 0.0
        %768 = vmatpush.msra.mxu0 0.0
        %769 = vmatpush.msra.mxu0 0.0
        %770 = vmatpush.msra.mxu0 0.0
        %771 = vmatpush.msra.mxu0 %v697
        %772 = vmatpush.msra.mxu0 %v695
        %773 = vmatpush.msra.mxu0 %v693
        %774 = vmatpush.msra.mxu0 %v691
        %775 = vmatmul.f32.gmra.mxu0 %v719
        %v776 = vpop.f32.mrf.mxu0
        %v777 = vadd.f32 %v704, %v776
        %778 = vmatmul.f32.gmra.mxu0 %v722
        %v779 = vpop.f32.mrf.mxu0
        %v780 = vadd.f32 %v708, %v779
        %781 = vmatmul.f32.gmra.mxu0 %v725
        %v782 = vpop.f32.mrf.mxu0
        %v783 = vadd.f32 %v712, %v782
        %784 = vmatmul.f32.gmra.mxu0 %v728
        %v785 = vpop.f32.mrf.mxu0
        %v786 = vadd.f32 %v716, %v785
        %787 = vdwg.mxu0
        %v788 = vlaneseq
        %v789 = vshrl.u32 %v788, 7
        %v790 = vadd.s32 %v789, 8
        %v791 = vadd.s32 %v789, 16
        %v792 = vadd.s32 %v789, 24
        %vm793 = vcmp.eq.s32.totalorder %v789, 30
        %vm794 = vcmp.eq.s32.totalorder %v790, 30
        %vm795 = vcmp.eq.s32.totalorder %v791, 30
        %vm796 = vcmp.eq.s32.totalorder %v792, 30
        %v797 = vxor.u32 %v748, 2147483648
        %v798 = vxor.u32 %v777, 2147483648
        %v799 = vxor.u32 %v751, 2147483648
        %v800 = vxor.u32 %v780, 2147483648
        %v801 = vxor.u32 %v754, 2147483648
        %v802 = vxor.u32 %v783, 2147483648
        %v803 = vxor.u32 %v757, 2147483648
        %v804 = vxor.u32 %v786, 2147483648
        %v805 = vmul.f32 %v797, 1.442695
        %v806 = vpow.pop %v805
        %v807 = vmul.f32 %v798, 1.442695
        %v808 = vpow.pop %v807
        %v809 = vmul.f32 %v799, 1.442695
        %v810 = vpow.pop %v809
        %v811 = vmul.f32 %v800, 1.442695
        %v812 = vpow.pop %v811
        %v813 = vmul.f32 %v801, 1.442695
        %v814 = vpow.pop %v813
        %v815 = vmul.f32 %v802, 1.442695
        %v816 = vpow.pop %v815
        %v817 = vmul.f32 %v803, 1.442695
        %v818 = vpow.pop %v817
        %v819 = vmul.f32 %v804, 1.442695
        %v820 = vpow.pop %v819
        %v821 = vadd.f32 %v806, 1.0
        %v822 = vadd.f32 %v808, 1.0
        %v823 = vadd.f32 %v810, 1.0
        %v824 = vadd.f32 %v812, 1.0
        %v825 = vadd.f32 %v814, 1.0
        %v826 = vadd.f32 %v816, 1.0
        %v827 = vadd.f32 %v818, 1.0
        %v828 = vadd.f32 %v820, 1.0
        %v829 = vrcp.pop %v821
        %v830 = vmul.f32 %v821, %v829
        %v831 = vsub.f32 1.0, %v830
        %v832 = vmul.f32 %v829, %v831
        %v833 = vadd.f32 %v829, %v832
        %vm834 = vweird.f32 %v821
        %vm835 = vweird.f32 %v829
        %vm836 = vmor %vm834, %vm835
        %v837 = vsel %vm836, %v829, %v833
        %v838 = vand.u32 2147483647, %v821
        %vm839 = vcmp.eq.f32.partialorder %v838, 8.507059e+37
        %v840 = vand.u32 %v821, 2147483648
        %v841 = vor.u32 1.1754944e-38, %v840
        %v842 = vsel %vm839, %v841, %v837
        %v843 = vmul.f32 1.0, %v842
        %v844 = vrcp.pop %v822
        %v845 = vmul.f32 %v822, %v844
        %v846 = vsub.f32 1.0, %v845
        %v847 = vmul.f32 %v844, %v846
        %v848 = vadd.f32 %v844, %v847
        %vm849 = vweird.f32 %v822
        %vm850 = vweird.f32 %v844
        %vm851 = vmor %vm849, %vm850
        %v852 = vsel %vm851, %v844, %v848
        %v853 = vand.u32 2147483647, %v822
        %vm854 = vcmp.eq.f32.partialorder %v853, 8.507059e+37
        %v855 = vand.u32 %v822, 2147483648
        %v856 = vor.u32 1.1754944e-38, %v855
        %v857 = vsel %vm854, %v856, %v852
        %v858 = vmul.f32 1.0, %v857
        %v859 = vrcp.pop %v823
        %v860 = vmul.f32 %v823, %v859
        %v861 = vsub.f32 1.0, %v860
        %v862 = vmul.f32 %v859, %v861
        %v863 = vadd.f32 %v859, %v862
        %vm864 = vweird.f32 %v823
        %vm865 = vweird.f32 %v859
        %vm866 = vmor %vm864, %vm865
        %v867 = vsel %vm866, %v859, %v863
        %v868 = vand.u32 2147483647, %v823
        %vm869 = vcmp.eq.f32.partialorder %v868, 8.507059e+37
        %v870 = vand.u32 %v823, 2147483648
        %v871 = vor.u32 1.1754944e-38, %v870
        %v872 = vsel %vm869, %v871, %v867
        %v873 = vmul.f32 1.0, %v872
        %v874 = vrcp.pop %v824
        %v875 = vmul.f32 %v824, %v874
        %v876 = vsub.f32 1.0, %v875
        %v877 = vmul.f32 %v874, %v876
        %v878 = vadd.f32 %v874, %v877
        %vm879 = vweird.f32 %v824
        %vm880 = vweird.f32 %v874
        %vm881 = vmor %vm879, %vm880
        %v882 = vsel %vm881, %v874, %v878
        %v883 = vand.u32 2147483647, %v824
        %vm884 = vcmp.eq.f32.partialorder %v883, 8.507059e+37
        %v885 = vand.u32 %v824, 2147483648
        %v886 = vor.u32 1.1754944e-38, %v885
        %v887 = vsel %vm884, %v886, %v882
        %v888 = vmul.f32 1.0, %v887
        %v889 = vrcp.pop %v825
        %v890 = vmul.f32 %v825, %v889
        %v891 = vsub.f32 1.0, %v890
        %v892 = vmul.f32 %v889, %v891
        %v893 = vadd.f32 %v889, %v892
        %vm894 = vweird.f32 %v825
        %vm895 = vweird.f32 %v889
        %vm896 = vmor %vm894, %vm895
        %v897 = vsel %vm896, %v889, %v893
        %v898 = vand.u32 2147483647, %v825
        %vm899 = vcmp.eq.f32.partialorder %v898, 8.507059e+37
        %v900 = vand.u32 %v825, 2147483648
        %v901 = vor.u32 1.1754944e-38, %v900
        %v902 = vsel %vm899, %v901, %v897
        %v903 = vmul.f32 1.0, %v902
        %v904 = vrcp.pop %v826
        %v905 = vmul.f32 %v826, %v904
        %v906 = vsub.f32 1.0, %v905
        %v907 = vmul.f32 %v904, %v906
        %v908 = vadd.f32 %v904, %v907
        %vm909 = vweird.f32 %v826
        %vm910 = vweird.f32 %v904
        %vm911 = vmor %vm909, %vm910
        %v912 = vsel %vm911, %v904, %v908
        %v913 = vand.u32 2147483647, %v826
        %vm914 = vcmp.eq.f32.partialorder %v913, 8.507059e+37
        %v915 = vand.u32 %v826, 2147483648
        %v916 = vor.u32 1.1754944e-38, %v915
        %v917 = vsel %vm914, %v916, %v912
        %v918 = vmul.f32 1.0, %v917
        %v919 = vrcp.pop %v827
        %v920 = vmul.f32 %v827, %v919
        %v921 = vsub.f32 1.0, %v920
        %v922 = vmul.f32 %v919, %v921
        %v923 = vadd.f32 %v919, %v922
        %vm924 = vweird.f32 %v827
        %vm925 = vweird.f32 %v919
        %vm926 = vmor %vm924, %vm925
        %v927 = vsel %vm926, %v919, %v923
        %v928 = vand.u32 2147483647, %v827
        %vm929 = vcmp.eq.f32.partialorder %v928, 8.507059e+37
        %v930 = vand.u32 %v827, 2147483648
        %v931 = vor.u32 1.1754944e-38, %v930
        %v932 = vsel %vm929, %v931, %v927
        %v933 = vmul.f32 1.0, %v932
        %v934 = vrcp.pop %v828
        %v935 = vmul.f32 %v828, %v934
        %v936 = vsub.f32 1.0, %v935
        %v937 = vmul.f32 %v934, %v936
        %v938 = vadd.f32 %v934, %v937
        %vm939 = vweird.f32 %v828
        %vm940 = vweird.f32 %v934
        %vm941 = vmor %vm939, %vm940
        %v942 = vsel %vm941, %v934, %v938
        %v943 = vand.u32 2147483647, %v828
        %vm944 = vcmp.eq.f32.partialorder %v943, 8.507059e+37
        %v945 = vand.u32 %v828, 2147483648
        %v946 = vor.u32 1.1754944e-38, %v945
        %v947 = vsel %vm944, %v946, %v942
        %v948 = vmul.f32 1.0, %v947
        %v949 = vsel %vm793, %v843, %v748
        %v950 = vsel %vm793, %v858, %v777
        %v951 = vsel %vm794, %v873, %v751
        %v952 = vsel %vm794, %v888, %v780
        %v953 = vsel %vm795, %v903, %v754
        %v954 = vsel %vm795, %v918, %v783
        %v955 = vsel %vm796, %v933, %v757
        %v956 = vsel %vm796, %v948, %v786
        %957 = vst [vmem:[%s210] sm:$0xff] %v949
        %958 = vst [vmem:[%s210 + $0x8] sm:$0xff] %v950
        %959 = vst [vmem:[%s210 + $0x10] sm:$0xff] %v951
        %960 = vst [vmem:[%s210 + $0x18] sm:$0xff] %v952
        %961 = vst [vmem:[%s210 + $0x20] sm:$0xff] %v953
        %962 = vst [vmem:[%s210 + $0x28] sm:$0xff] %v954
        %963 = vst [vmem:[%s210 + $0x30] sm:$0xff] %v955
        %964 = vst [vmem:[%s210 + $0x38] sm:$0xff] %v956
        %s965 = sand.u32 %s98, 1
        %s966 = scalar_lea.sflag [#allocation4], %s965
        %s967 = sand.u32 %s98, 1
        %s968 = smul.addr %s967, 64
        %s969 = scalar_lea.vmem [#allocation3], %s968
        // Predicated region
        $region56: #{tpu_custom_call.1} parent=50 // pred_check
          %p970 = pneg %p108
        $region57: #{tpu_custom_call.1} parent=50 // pred_check_branch
          %972 = sbr.rel (%p970) target = $region59
        $region58: #{tpu_custom_call.1} parent=50 // pred_region
          %s973 = smul.u32 2, %s17
          %975 = vsyncadd %s966, 0
          %s976 = smul.addr %s973, 8
          %s977 = scalar_lea.hbm %s3, %s976
          %s978 = sshll.u32 %s969, 4
          %s979 = int_to_ptr.vmem [resolvable:$true] %s978
          %s980 = sshll.u32 %s977, 4
          %s981 = int_to_ptr.hbm [resolvable:$true] %s980
          %986 = dma.vmem_to_hbm [thread:$0]  %s979, 1024, %s981, %s966, 256, 512, 16
        $region59: #{tpu_custom_call.1} parent=50 // pred_fallthru
          _
      $region51: #{tpu_custom_call.1} parent=5 // pred_fallthru
        _
      %p987 = scmp.le.s32.totalorder 2, %s12
      // Predicated region
      $region60: #{tpu_custom_call.1} parent=5 // pred_check
        %p988 = pneg %p987
      $region61: #{tpu_custom_call.1} parent=5 // pred_check_branch
        %990 = sbr.rel (%p988) target = $region63
      $region62: #{tpu_custom_call.1} parent=5 // pred_region
        %s991 = ssub.s32 %s12, 2
        // Predicated region
        $region64: #{tpu_custom_call.1} parent=62 // pred_check
          %p992 = pneg %p114
        $region65: #{tpu_custom_call.1} parent=62 // pred_check_branch
          %994 = sbr.rel (%p992) target = $region67
        $region66: #{tpu_custom_call.1} parent=62 // pred_region
          %s995 = sand.u32 %s99, 1
          %s996 = scalar_lea.sflag [#allocation4], %s995
          %s997 = sand.u32 %s99, 1
          %s998 = smul.addr %s997, 64
          %s999 = scalar_lea.vmem [#allocation3], %s998
          %1001 = dma.done %s996, 1024
        $region67: #{tpu_custom_call.1} parent=62 // pred_fallthru
          _
      $region63: #{tpu_custom_call.1} parent=5 // pred_fallthru
        _
    $region6: #{tpu_custom_call.1} parent=1 // loop_footer
      %s16 = sadd.s32 1, %s12
    $region7: #{tpu_custom_call.1} parent=1 // loop_footer_branch
      %11 = sbr.rel target = $region3
    $region8: #{tpu_custom_call.1} parent=1 // loop_exit
      _
    %1002 = vsyncpa [#allocation4], 1
    %s1003 = scalar_lea.sflag [#allocation4], 1
    %1004 = vsyncpa %s1003, 1

</llo_original>
